<compile_context>
chip_gen: v5e
topology: v5e:2x2
jax: 0.10.0
libtpu: 0.0.40
codegen_flags: <defaults>
</compile_context>

<pallas_src>
import functools

import jax
import jax.numpy as jnp
from jax.experimental import pallas as pl
from jax.experimental.pallas import tpu as pltpu

BN_EPS = 1e-5
# <= default scoped VMEM on v6e/v7x, above v5e's 16 MiB default; tiles below stay far under it.
_VMEM_LIMIT_BYTES = 32 * 1024 * 1024
# TODO(synk): re-derive max_tile separately for v7x (64 MiB physical VMEM, 2 TensorCores).


def _pick_tile(m, max_tile):
    """Largest multiple of 128 that divides m and is <= max_tile (keeps tiles lane-dense)."""
    assert m % 128 == 0, f"M={m} must be a multiple of 128"  # TODO(synk): pad ragged M.
    t = 128
    for cand in range(128, min(m, max_tile) + 1, 128):
        if m % cand == 0:
            t = cand
    return t


# ------------------------------------------------------------------ Kernel A ---
def _conv_stats_kernel(w_ref, p_ref, y_ref, sum_ref, sq_ref):
    # w_ref: (Cout, 9*Cin) resident; p_ref: (9*Cin, TM) pipelined tile;
    # y_ref: (Cout, TM) lane-dense conv tile; sum_ref/sq_ref: (1, Cout, 1) per-tile partials.
    y = jnp.dot(w_ref[...], p_ref[...], preferred_element_type=jnp.float32)  # MXU, f32 accum
    y_ref[...] = y.astype(y_ref.dtype)
    # Per-channel partial batch statistics (cross-lane reduce -> XLU, f32).
    sum_ref[...] = jnp.sum(y, axis=1, keepdims=True)[None]
    sq_ref[...] = jnp.sum(y * y, axis=1, keepdims=True)[None]


# ------------------------------------------------------------------ Kernel B ---
def _bn_relu_pool_kernel(y_ref, inv_ref, shift_ref, out_ref):
    # y_ref: (Cout, 4, TMp) — axis 1 = four members of each 2x2 pool window.
    # inv_ref/shift_ref: (Cout, 1, 1) precomputed BN scale/shift. out_ref: (Cout, TMp).
    y = y_ref[...].astype(jnp.float32)                 # keep elementwise math in f32 (v5e)
    yn = y * inv_ref[...] + shift_ref[...]             # BN normalize + affine
    pooled = jnp.maximum(jnp.maximum(yn[:, 0, :], yn[:, 1, :]),
                         jnp.maximum(yn[:, 2, :], yn[:, 3, :]))   # 2x2 max pool
    out_ref[...] = jnp.maximum(pooled, 0.0).astype(out_ref.dtype)  # ReLU commutes with max


# ---------------------------------------------------------------------- glue ---
def _build_patches_t(x_nchw, k, pad):
    """Transposed, pool-ordered im2col: returns (k*k*Cin, M) with row index (kh, kw, cin)
    and column index (dy, dx, n, h//2, w//2) where output pixel (h, w) = (2*h2+dy, 2*w2+dx)."""
    n, cin, h, w = x_nchw.shape
    xp = jnp.pad(x_nchw, ((0, 0), (0, 0), (pad, pad), (pad, pad)))
    rows = []
    for kh in range(k):
        for kw in range(k):
            s = xp[:, :, kh:kh + h, kw:kw + w]               # (N, Cin, H, W)
            s = s.reshape(n, cin, h // 2, 2, w // 2, 2)      # (n, cin, h2, dy, w2, dx)
            s = jnp.transpose(s, (1, 3, 5, 0, 2, 4))         # (cin, dy, dx, n, h2, w2)
            rows.append(s.reshape(cin, -1))                  # (Cin, M)
    return jnp.concatenate(rows, axis=0)                     # (k*k*Cin, M)
    # TODO(synk): for large Cin the 9x im2col expansion dominates HBM traffic; switch to a
    # direct conv (block over H rows, 9 accumulated (tile,Cin)@(Cin,Cout) matmuls) there.


def conv_block_forward(x_nchw, w_oihw, b, gamma, beta, *,
                       compute_dtype=jnp.float32, max_tile=2048):
    """ConvBlock forward: (N, Cin, H, W) f32 -> (N, Cout, H//2, W//2) f32."""
    del b  # Conv bias is a no-op under train-mode BatchNorm (cancels with the batch mean).
    n, cin, h, w = x_nchw.shape
    cout, _, k, _ = w_oihw.shape
    assert h % 2 == 0 and w % 2 == 0
    m = n * h * w
    mp = m // 4                                      # pooled spatial size N*(H//2)*(W//2)
    kc = k * k * cin

    patches_t = _build_patches_t(x_nchw, k, pad=1).astype(compute_dtype)      # (kc, M)
    # weight (Cout, Cin, kh, kw) -> (Cout, kh, kw, Cin) -> (Cout, kc): matches patch row order.
    w_t = jnp.transpose(w_oihw, (0, 2, 3, 1)).reshape(cout, kc).astype(compute_dtype)

    params = pltpu.CompilerParams(dimension_semantics=("parallel",),
                                  vmem_limit_bytes=_VMEM_LIMIT_BYTES)

    tm = _pick_tile(m, max_tile)
    conv_out, sums, sqs = pl.pallas_call(
        _conv_stats_kernel,
        grid=(m // tm,),
        in_specs=[
            pl.BlockSpec((cout, kc), lambda i: (0, 0)),       # weights resident across grid
            pl.BlockSpec((kc, tm), lambda i: (0, i)),         # patch tile (pipelined)
        ],
        out_specs=(
            pl.BlockSpec((cout, tm), lambda i: (0, i)),       # lane-dense conv tile
            pl.BlockSpec((1, cout, 1), lambda i: (i, 0, 0)),  # per-tile sum
            pl.BlockSpec((1, cout, 1), lambda i: (i, 0, 0)),  # per-tile sum of squares
        ),
        out_shape=(
            jax.ShapeDtypeStruct((cout, m), compute_dtype),
            jax.ShapeDtypeStruct((m // tm, cout, 1), jnp.float32),
            jax.ShapeDtypeStruct((m // tm, cout, 1), jnp.float32),
        ),
        compiler_params=params,
    )(w_t, patches_t)

    # Finalize batch stats from the tiny per-tile partials (keeps the grid axis "parallel").
    s1 = jnp.sum(sums, axis=0)[:, 0]                  # (Cout,)
    s2 = jnp.sum(sqs, axis=0)[:, 0]                   # (Cout,)
    mean = s1 / m
    var = s2 / m - mean * mean                        # biased variance (train-mode BN)
    inv = (gamma * jax.lax.rsqrt(var + BN_EPS)).astype(jnp.float32)
    shift = (beta - mean * inv).astype(jnp.float32)
    # TODO(synk): BatchNorm running-stat (momentum) bookkeeping is a training side effect and
    # does not affect this forward output; not implemented.

    tmp = _pick_tile(mp, max_tile)
    pooled = pl.pallas_call(
        _bn_relu_pool_kernel,
        grid=(mp // tmp,),
        in_specs=[
            pl.BlockSpec((cout, 4, tmp), lambda i: (0, 0, i)),
            pl.BlockSpec((cout, 1, 1), lambda i: (0, 0, 0)),
            pl.BlockSpec((cout, 1, 1), lambda i: (0, 0, 0)),
        ],
        out_specs=pl.BlockSpec((cout, tmp), lambda i: (0, i)),
        out_shape=jax.ShapeDtypeStruct((cout, mp), jnp.float32),
        compiler_params=params,
    )(conv_out.reshape(cout, 4, mp),                  # free reshape: pool quadrant -> axis 1
      inv.reshape(cout, 1, 1), shift.reshape(cout, 1, 1))

    out = pooled.reshape(cout, n, h // 2, w // 2)
    return jnp.transpose(out, (1, 0, 2, 3))           # back to NCHW


# ----------------------------------------------------------------- reference ---
def _reference(x_nchw, w_oihw, b, gamma, beta):
    y = jax.lax.conv_general_dilated(
        x_nchw, w_oihw, window_strides=(1, 1), padding=((1, 1), (1, 1)),
        dimension_numbers=("NCHW", "OIHW", "NCHW"),
    ) + b[None, :, None, None]
    mean = y.mean(axis=(0, 2, 3), keepdims=True)
    var = y.var(axis=(0, 2, 3), keepdims=True)        # biased, training-mode BN
    yn = (y - mean) / jnp.sqrt(var + BN_EPS) * gamma[None, :, None, None] + beta[None, :, None, None]
    yr = jnp.maximum(yn, 0.0)
    nn_, c, hh, ww = yr.shape
    return yr.reshape(nn_, c, hh // 2, 2, ww // 2, 2).max(axis=(3, 5))


if __name__ == "__main__":
    key = jax.random.PRNGKey(0)
    k_x, k_w, k_b, k_g, k_be = jax.random.split(key, 5)

    N, Cin, Cout, H, W = 2, 4, 8, 16, 16
    x = jax.random.normal(k_x, (N, Cin, H, W), dtype=jnp.float32)
    w = jax.random.normal(k_w, (Cout, Cin, 3, 3), dtype=jnp.float32) * 0.1
    b = jax.random.normal(k_b, (Cout,), dtype=jnp.float32) * 0.1
    gamma = 1.0 + 0.2 * jax.random.normal(k_g, (Cout,), dtype=jnp.float32)   # BN weight
    beta = 0.1 * jax.random.normal(k_be, (Cout,), dtype=jnp.float32)         # BN bias

    ref = _reference(x, w, b, gamma, beta)

    # f32 path, forcing a multi-tile grid over M (M=512 -> two 256-lane tiles).
    fwd_f32 = jax.jit(functools.partial(conv_block_forward,
                                        compute_dtype=jnp.float32, max_tile=256))
    out = jax.block_until_ready(fwd_f32(x, w, b, gamma, beta))
    assert out.shape == (N, Cout, H // 2, W // 2), out.shape
    err = float(jnp.max(jnp.abs(out - ref)))
    assert err < 2e-4, f"f32 path max abs err {err}"

    # bf16 MXU-operand / bf16-intermediate path (halves HBM traffic); bf16-level tolerance.
    fwd_bf16 = jax.jit(functools.partial(conv_block_forward, compute_dtype=jnp.bfloat16))
    out_b = jax.block_until_ready(fwd_bf16(x, w, b, gamma, beta))
    err_b = float(jnp.max(jnp.abs(out_b - ref)))
    assert err_b < 8e-2, f"bf16 path max abs err {err_b}"

    print("KERNEL_OK")
</pallas_src>

<mosaic_0001>
module attributes {stable_mosaic.version = 11 : i64} {
  func.func @_conv_stats_kernel(%arg0: i32, %arg1: memref<8x36xf32, #tpu.memory_space<vmem>>, %arg2: memref<36x256xf32, #tpu.memory_space<vmem>>, %arg3: memref<8x256xf32, #tpu.memory_space<vmem>>, %arg4: memref<1x8x1xf32, #tpu.memory_space<vmem>>, %arg5: memref<1x8x1xf32, #tpu.memory_space<vmem>>) attributes {dimension_semantics = [#tpu.dimension_semantics<parallel>], iteration_bounds = array<i64: 2>, scalar_prefetch = 0 : i64, scratch_operands = 0 : i64, tpu.core_type = #tpu.core_type<tc>, window_params = [{pipeline_mode = #tpu.pipeline_mode<synchronous>, transform_indices = @transform_0, window_bounds = array<i64: 8, 36>}, {transform_indices = @transform_1, window_bounds = array<i64: 36, 256>}, {transform_indices = @transform_2, window_bounds = array<i64: 8, 256>}, {transform_indices = @transform_3, window_bounds = array<i64: 1, 8, 1>}, {transform_indices = @transform_4, window_bounds = array<i64: 1, 8, 1>}]} {
    %c0 = arith.constant 0 : index
    %c0_0 = arith.constant 0 : index
    %0 = vector.load %arg1[%c0, %c0_0] : memref<8x36xf32, #tpu.memory_space<vmem>>, vector<8x36xf32>
    %c0_1 = arith.constant 0 : index
    %c0_2 = arith.constant 0 : index
    %1 = vector.load %arg2[%c0_1, %c0_2] : memref<36x256xf32, #tpu.memory_space<vmem>>, vector<36x256xf32>
    %cst = arith.constant dense<0.000000e+00> : vector<8x256xf32>
    %2 = tpu.matmul %0, %1, %cst {dimension_numbers = #tpu.dot_dimension_numbers<[1], [0], [0], [1], [0, 0, 1, 1], [], []>} : vector<8x36xf32>, vector<36x256xf32>, vector<8x256xf32> -> vector<8x256xf32>
    %c0_3 = arith.constant 0 : index
    %c0_4 = arith.constant 0 : index
    %3 = vector.load %arg3[%c0_3, %c0_4] : memref<8x256xf32, #tpu.memory_space<vmem>>, vector<8x256xf32>
    tpu.vector_store %arg3[%c0_3, %c0_4], %2 {strides = array<i32>} : memref<8x256xf32, #tpu.memory_space<vmem>>, vector<8x256xf32>,
    %cst_5 = arith.constant dense<0.000000e+00> : vector<8xf32>
    %4 = vector.multi_reduction <add>, %2, %cst_5 [1] : vector<8x256xf32> to vector<8xf32>
    %5 = vector.shape_cast %4 : vector<8xf32> to vector<8x1xf32>
    %6 = vector.shape_cast %5 : vector<8x1xf32> to vector<1x8x1xf32>
    %c0_6 = arith.constant 0 : index
    %c0_7 = arith.constant 0 : index
    %c0_8 = arith.constant 0 : index
    %7 = vector.load %arg4[%c0_6, %c0_7, %c0_8] : memref<1x8x1xf32, #tpu.memory_space<vmem>>, vector<1x8x1xf32>
    tpu.vector_store %arg4[%c0_6, %c0_7, %c0_8], %6 {strides = array<i32>} : memref<1x8x1xf32, #tpu.memory_space<vmem>>, vector<1x8x1xf32>,
    %8 = arith.mulf %2, %2 : vector<8x256xf32>
    %cst_9 = arith.constant dense<0.000000e+00> : vector<8xf32>
    %9 = vector.multi_reduction <add>, %8, %cst_9 [1] : vector<8x256xf32> to vector<8xf32>
    %10 = vector.shape_cast %9 : vector<8xf32> to vector<8x1xf32>
    %11 = vector.shape_cast %10 : vector<8x1xf32> to vector<1x8x1xf32>
    %c0_10 = arith.constant 0 : index
    %c0_11 = arith.constant 0 : index
    %c0_12 = arith.constant 0 : index
    %12 = vector.load %arg5[%c0_10, %c0_11, %c0_12] : memref<1x8x1xf32, #tpu.memory_space<vmem>>, vector<1x8x1xf32>
    tpu.vector_store %arg5[%c0_10, %c0_11, %c0_12], %11 {strides = array<i32>} : memref<1x8x1xf32, #tpu.memory_space<vmem>>, vector<1x8x1xf32>,
    return
  }
  func.func @transform_0(%arg0: i32) -> (i32, i32) {
    %c0_i32 = arith.constant 0 : i32
    %c0_i32_0 = arith.constant 0 : i32
    %c0_i32_1 = arith.constant 0 : i32
    return %c0_i32, %c0_i32_0 : i32, i32
  }
  func.func @transform_1(%arg0: i32) -> (i32, i32) {
    %c0_i32 = arith.constant 0 : i32
    %c0_i32_0 = arith.constant 0 : i32
    return %c0_i32, %arg0 : i32, i32
  }
  func.func @transform_2(%arg0: i32) -> (i32, i32) {
    %c0_i32 = arith.constant 0 : i32
    %c0_i32_0 = arith.constant 0 : i32
    return %c0_i32, %arg0 : i32, i32
  }
  func.func @transform_3(%arg0: i32) -> (i32, i32, i32) {
    %c0_i32 = arith.constant 0 : i32
    %c0_i32_0 = arith.constant 0 : i32
    %c0_i32_1 = arith.constant 0 : i32
    return %arg0, %c0_i32, %c0_i32_0 : i32, i32, i32
  }
  func.func @transform_4(%arg0: i32) -> (i32, i32, i32) {
    %c0_i32 = arith.constant 0 : i32
    %c0_i32_0 = arith.constant 0 : i32
    %c0_i32_1 = arith.constant 0 : i32
    return %arg0, %c0_i32, %c0_i32_0 : i32, i32, i32
  }
}

module attributes {stable_mosaic.version = 11 : i64} {
  func.func @_bn_relu_pool_kernel(%arg0: i32, %arg1: memref<8x4x128xf32, #tpu.memory_space<vmem>>, %arg2: memref<8x1x1xf32, #tpu.memory_space<vmem>>, %arg3: memref<8x1x1xf32, #tpu.memory_space<vmem>>, %arg4: memref<8x128xf32, #tpu.memory_space<vmem>>) attributes {dimension_semantics = [#tpu.dimension_semantics<parallel>], iteration_bounds = array<i64: 1>, scalar_prefetch = 0 : i64, scratch_operands = 0 : i64, tpu.core_type = #tpu.core_type<tc>, window_params = [{transform_indices = @transform_0, window_bounds = array<i64: 8, 4, 128>}, {pipeline_mode = #tpu.pipeline_mode<synchronous>, transform_indices = @transform_1, window_bounds = array<i64: 8, 1, 1>}, {pipeline_mode = #tpu.pipeline_mode<synchronous>, transform_indices = @transform_2, window_bounds = array<i64: 8, 1, 1>}, {transform_indices = @transform_3, window_bounds = array<i64: 8, 128>}]} {
    %c0 = arith.constant 0 : index
    %c0_0 = arith.constant 0 : index
    %c0_1 = arith.constant 0 : index
    %0 = vector.load %arg1[%c0, %c0_0, %c0_1] : memref<8x4x128xf32, #tpu.memory_space<vmem>>, vector<8x4x128xf32>
    %c0_2 = arith.constant 0 : index
    %c0_3 = arith.constant 0 : index
    %c0_4 = arith.constant 0 : index
    %1 = vector.load %arg2[%c0_2, %c0_3, %c0_4] : memref<8x1x1xf32, #tpu.memory_space<vmem>>, vector<8x1x1xf32>
    %2 = vector.broadcast %1 : vector<8x1x1xf32> to vector<8x4x128xf32>
    %3 = arith.mulf %0, %2 : vector<8x4x128xf32>
    %c0_5 = arith.constant 0 : index
    %c0_6 = arith.constant 0 : index
    %c0_7 = arith.constant 0 : index
    %4 = vector.load %arg3[%c0_5, %c0_6, %c0_7] : memref<8x1x1xf32, #tpu.memory_space<vmem>>, vector<8x1x1xf32>
    %5 = vector.broadcast %4 : vector<8x1x1xf32> to vector<8x4x128xf32>
    %6 = arith.addf %3, %5 : vector<8x4x128xf32>
    %7 = vector.extract_strided_slice %6 {offsets = [0, 0, 0], sizes = [8, 1, 128], strides = [1, 1, 1]} : vector<8x4x128xf32> to vector<8x1x128xf32>
    %8 = vector.shape_cast %7 : vector<8x1x128xf32> to vector<8x128xf32>
    %9 = vector.extract_strided_slice %6 {offsets = [0, 1, 0], sizes = [8, 1, 128], strides = [1, 1, 1]} : vector<8x4x128xf32> to vector<8x1x128xf32>
    %10 = vector.shape_cast %9 : vector<8x1x128xf32> to vector<8x128xf32>
    %11 = arith.maximumf %8, %10 : vector<8x128xf32>
    %12 = vector.extract_strided_slice %6 {offsets = [0, 2, 0], sizes = [8, 1, 128], strides = [1, 1, 1]} : vector<8x4x128xf32> to vector<8x1x128xf32>
    %13 = vector.shape_cast %12 : vector<8x1x128xf32> to vector<8x128xf32>
    %14 = vector.extract_strided_slice %6 {offsets = [0, 3, 0], sizes = [8, 1, 128], strides = [1, 1, 1]} : vector<8x4x128xf32> to vector<8x1x128xf32>
    %15 = vector.shape_cast %14 : vector<8x1x128xf32> to vector<8x128xf32>
    %16 = arith.maximumf %13, %15 : vector<8x128xf32>
    %17 = arith.maximumf %11, %16 : vector<8x128xf32>
    %cst = arith.constant 0.000000e+00 : f32
    %18 = vector.broadcast %cst : f32 to vector<8x128xf32>
    %19 = arith.maximumf %17, %18 : vector<8x128xf32>
    %c0_8 = arith.constant 0 : index
    %c0_9 = arith.constant 0 : index
    %20 = vector.load %arg4[%c0_8, %c0_9] : memref<8x128xf32, #tpu.memory_space<vmem>>, vector<8x128xf32>
    tpu.vector_store %arg4[%c0_8, %c0_9], %19 {strides = array<i32>} : memref<8x128xf32, #tpu.memory_space<vmem>>, vector<8x128xf32>,
    return
  }
  func.func @transform_0(%arg0: i32) -> (i32, i32, i32) {
    %c0_i32 = arith.constant 0 : i32
    %c0_i32_0 = arith.constant 0 : i32
    %c0_i32_1 = arith.constant 0 : i32
    return %c0_i32, %c0_i32_0, %arg0 : i32, i32, i32
  }
  func.func @transform_1(%arg0: i32) -> (i32, i32, i32) {
    %c0_i32 = arith.constant 0 : i32
    %c0_i32_0 = arith.constant 0 : i32
    %c0_i32_1 = arith.constant 0 : i32
    %c0_i32_2 = arith.constant 0 : i32
    return %c0_i32, %c0_i32_0, %c0_i32_1 : i32, i32, i32
  }
  func.func @transform_2(%arg0: i32) -> (i32, i32, i32) {
    %c0_i32 = arith.constant 0 : i32
    %c0_i32_0 = arith.constant 0 : i32
    %c0_i32_1 = arith.constant 0 : i32
    %c0_i32_2 = arith.constant 0 : i32
    return %c0_i32, %c0_i32_0, %c0_i32_1 : i32, i32, i32
  }
  func.func @transform_3(%arg0: i32) -> (i32, i32) {
    %c0_i32 = arith.constant 0 : i32
    %c0_i32_0 = arith.constant 0 : i32
    return %c0_i32, %arg0 : i32, i32
  }
}

</mosaic_0001>

<llo_original>
// kernel: conv_block_forward.2
$region0: #{conv_block_forward.2}
  #allocation0 [shape = 'u32[]', space=smem, size = 0x4, offset = 0x4, fixed_abs, tag = 'smem constant byte address 0x4 - core index']
  #allocation1 [shape = 'u32[72,128]{1,0:T(1,128)}', space=vmem, size = 0x9000, scoped, tag = 'internal scratch']
  %s0 = inlined_call_operand.vmem [shape: f32[8,36], index: 0, kind: input, shape index: {}]
  %s1 = inlined_call_operand.vmem [shape: f32[36,512], index: 1, kind: input, shape index: {}]
  %s2 = inlined_call_operand.vmem [shape: f32[8,512], index: 2, kind: output, shape index: {0}]
  %s3 = inlined_call_operand.vmem [shape: f32[2,8,1], index: 3, kind: output, shape index: {1}]
  %s4 = inlined_call_operand.vmem [shape: f32[2,8,1], index: 4, kind: output, shape index: {2}]
  %5 = xla_tuple %s2, %s3, %s4
  %s6 = sld [smem:[#allocation0]]
  $region80: #{conv_block_forward.2} parent=0
    _
  %s8 = ssub.s32 1, %s6
  %s9 = scalar_select 0, %s8, %s6
  $region1: #{conv_block_forward.2} parent=0
    #allocation2 [shape = 'u8[81920]{0}', space=vmem, size = 0x14000, scoped, tag = 'input window, operand 1']
    loop: start=0, step=1, limit=4
    $region2: #{conv_block_forward.2} parent=1 // loop_pre_header
      _
    $region3: #{conv_block_forward.2} parent=1 // loop_header
      %s11 = sphi 0, %s15
      %p12 = scmp.ge.s32.totalorder %s11, 4
      %s19 = sphi 0, %s19
      %s21 = sphi 0, %s19
      %s22 = sphi 0, %s21
      %s36 = sphi 0, %s22
      %s42 = sphi 0, %s44
      %s45 = sphi 0, %s42
      %s46 = sphi 0, %s45
      %s62 = sphi 0, %s46
      %s68 = sphi 0, %s70
      %s71 = sphi 0, %s68
      %s72 = sphi 0, %s71
      %s88 = sphi 0, %s72
      %s94 = sphi 0, %s96
      %s97 = sphi 0, %s94
      %s98 = sphi 0, %s97
      %s114 = sphi 0, %s98
      %s120 = sphi 0, %s122
      %s123 = sphi 0, %s120
      %s124 = sphi 0, %s123
      %s140 = sphi 0, %s124
    $region4: #{conv_block_forward.2} parent=1 // loop_header_branch
      %14 = sbr.rel (%p12) target = $region8
    $region5: #{conv_block_forward.2} parent=1 // loop_body
      %s16 = ssub.s32 %s11, 1
      %s17 = ssub.s32 %s11, 2
      %s18 = sadd.s32 %s11, 1
      %s20 = sadd.s32 %s19, 1
      %p23 = scmp.eq.s32.totalorder %s11, 1
      %p24 = scmp.ne.s32.totalorder %s19, %s21
      %p25 = scmp.eq.s32.totalorder %s11, 0
      %p26 = por %p24, %p25
      %p27 = scmp.ne.s32.totalorder %s19, %s21
      %p28 = scmp.eq.s32.totalorder %s16, 1
      %p29 = por %p27, %p28
      %p30 = scmp.ne.s32.totalorder %s21, %s22
      %p31 = scmp.eq.s32.totalorder %s16, 0
      %p32 = por %p30, %p31
      %p33 = scmp.ne.s32.totalorder %s21, %s22
      %p34 = scmp.eq.s32.totalorder %s17, 1
      %p35 = por %p33, %p34
      %p37 = scmp.ne.s32.totalorder %s22, %s36
      %p38 = scmp.eq.s32.totalorder %s17, 0
      %p39 = por %p37, %p38
      %s40 = ssub.s32 %s11, %s18
      %p41 = scmp.eq.s32.totalorder %s40, 0
      %s43 = sadd.s32 %s42, 1
      %s44 = scalar_select %p41, %s42, %s43
      %p47 = pneg %p41
      %p48 = scmp.eq.s32.totalorder %s11, 1
      %p49 = por %p47, %p48
      %p50 = scmp.ne.s32.totalorder %s42, %s45
      %p51 = scmp.eq.s32.totalorder %s11, 0
      %p52 = por %p50, %p51
      %p53 = scmp.ne.s32.totalorder %s42, %s45
      %p54 = scmp.eq.s32.totalorder %s16, 1
      %p55 = por %p53, %p54
      %p56 = scmp.ne.s32.totalorder %s45, %s46
      %p57 = scmp.eq.s32.totalorder %s16, 0
      %p58 = por %p56, %p57
      %p59 = scmp.ne.s32.totalorder %s45, %s46
      %p60 = scmp.eq.s32.totalorder %s17, 1
      %p61 = por %p59, %p60
      %p63 = scmp.ne.s32.totalorder %s46, %s62
      %p64 = scmp.eq.s32.totalorder %s17, 0
      %p65 = por %p63, %p64
      %s66 = ssub.s32 %s11, %s18
      %p67 = scmp.eq.s32.totalorder %s66, 0
      %s69 = sadd.s32 %s68, 1
      %s70 = scalar_select %p67, %s68, %s69
      %p73 = pneg %p67
      %p74 = scmp.eq.s32.totalorder %s11, 1
      %p75 = por %p73, %p74
      %p76 = scmp.ne.s32.totalorder %s68, %s71
      %p77 = scmp.eq.s32.totalorder %s11, 0
      %p78 = por %p76, %p77
      %p79 = scmp.ne.s32.totalorder %s68, %s71
      %p80 = scmp.eq.s32.totalorder %s16, 1
      %p81 = por %p79, %p80
      %p82 = scmp.ne.s32.totalorder %s71, %s72
      %p83 = scmp.eq.s32.totalorder %s16, 0
      %p84 = por %p82, %p83
      %p85 = scmp.ne.s32.totalorder %s71, %s72
      %p86 = scmp.eq.s32.totalorder %s17, 1
      %p87 = por %p85, %p86
      %p89 = scmp.ne.s32.totalorder %s72, %s88
      %p90 = scmp.eq.s32.totalorder %s17, 0
      %p91 = por %p89, %p90
      %s92 = ssub.s32 %s11, %s18
      %p93 = scmp.eq.s32.totalorder %s92, 0
      %s95 = sadd.s32 %s94, 1
      %s96 = scalar_select %p93, %s94, %s95
      %p99 = pneg %p93
      %p100 = scmp.eq.s32.totalorder %s11, 1
      %p101 = por %p99, %p100
      %p102 = scmp.ne.s32.totalorder %s94, %s97
      %p103 = scmp.eq.s32.totalorder %s11, 0
      %p104 = por %p102, %p103
      %p105 = scmp.ne.s32.totalorder %s94, %s97
      %p106 = scmp.eq.s32.totalorder %s16, 1
      %p107 = por %p105, %p106
      %p108 = scmp.ne.s32.totalorder %s97, %s98
      %p109 = scmp.eq.s32.totalorder %s16, 0
      %p110 = por %p108, %p109
      %p111 = scmp.ne.s32.totalorder %s97, %s98
      %p112 = scmp.eq.s32.totalorder %s17, 1
      %p113 = por %p111, %p112
      %p115 = scmp.ne.s32.totalorder %s98, %s114
      %p116 = scmp.eq.s32.totalorder %s17, 0
      %p117 = por %p115, %p116
      %s118 = ssub.s32 %s11, %s18
      %p119 = scmp.eq.s32.totalorder %s118, 0
      %s121 = sadd.s32 %s120, 1
      %s122 = scalar_select %p119, %s120, %s121
      %p125 = pneg %p119
      %p126 = scmp.eq.s32.totalorder %s11, 1
      %p127 = por %p125, %p126
      %p128 = scmp.ne.s32.totalorder %s120, %s123
      %p129 = scmp.eq.s32.totalorder %s11, 0
      %p130 = por %p128, %p129
      %p131 = scmp.ne.s32.totalorder %s120, %s123
      %p132 = scmp.eq.s32.totalorder %s16, 1
      %p133 = por %p131, %p132
      %p134 = scmp.ne.s32.totalorder %s123, %s124
      %p135 = scmp.eq.s32.totalorder %s16, 0
      %p136 = por %p134, %p135
      %p137 = scmp.ne.s32.totalorder %s123, %s124
      %p138 = scmp.eq.s32.totalorder %s17, 1
      %p139 = por %p137, %p138
      %p141 = scmp.ne.s32.totalorder %s124, %s140
      %p142 = scmp.eq.s32.totalorder %s17, 0
      %p143 = por %p141, %p142
      %p144 = scmp.le.s32.totalorder 1, %s11
      %p145 = scmp.lt.s32.totalorder %s11, 3
      %p146 = pnand %p144, %p145
      %p147 = pneg %p146
      // Predicated region
      $region9: #{conv_block_forward.2} parent=5 // pred_check
        _
      $region10: #{conv_block_forward.2} parent=5 // pred_check_branch
        %149 = sbr.rel (%p146) target = $region12
      $region11: #{conv_block_forward.2} parent=5 // pred_region
        %s150 = ssub.s32 %s11, 1
        // Predicated region
        $region13: #{conv_block_forward.2} parent=11 // pred_check
          %p151 = pneg %p32
        $region14: #{conv_block_forward.2} parent=11 // pred_check_branch
          %153 = sbr.rel (%p151) target = $region16
        $region15: #{conv_block_forward.2} parent=11 // pred_region
          _
        $region16: #{conv_block_forward.2} parent=11 // pred_fallthru
          _
      $region12: #{conv_block_forward.2} parent=5 // pred_fallthru
        _
      %p154 = scmp.lt.s32.totalorder %s11, 2
      // Predicated region
      $region17: #{conv_block_forward.2} parent=5 // pred_check
        %p155 = pneg %p154
      $region18: #{conv_block_forward.2} parent=5 // pred_check_branch
        %157 = sbr.rel (%p155) target = $region20
      $region19: #{conv_block_forward.2} parent=5 // pred_region
        // Predicated region
        $region21: #{conv_block_forward.2} parent=19 // pred_check
          %p158 = pneg %p52
        $region22: #{conv_block_forward.2} parent=19 // pred_check_branch
          %160 = sbr.rel (%p158) target = $region24
        $region23: #{conv_block_forward.2} parent=19 // pred_region
          %s161 = sand.u32 %s42, 1
          %s162 = sand.u32 %s42, 1
          %s163 = smul.addr %s162, 80
          %s164 = scalar_lea.vmem [#allocation2], %s163
          %s165 = smul.u32 2, %s11
          %s166 = smul.addr %s165, 8
          %s167 = scalar_lea.vmem %s1, %s166
          // Predicated region
          $region25: #{conv_block_forward.2} parent=23 // pred_check
            _
          $region26: #{conv_block_forward.2} parent=23 // pred_check_branch
            %169 = sbr.rel (0) target = $region28
          $region27: #{conv_block_forward.2} parent=23 // pred_region
            // Predicated region
            $region29: #{conv_block_forward.2} parent=27 // pred_check
              _
            $region30: #{conv_block_forward.2} parent=27 // pred_check_branch
              %171 = sbr.rel (0) target = $region32
            $region31: #{conv_block_forward.2} parent=27 // pred_region
              loop: start=0, step=1, limit=1
              $region33: #{conv_block_forward.2} parent=31 // loop_pre_header
                _
              $region34: #{conv_block_forward.2} parent=31 // loop_header
                %s173 = sphi 0, %s177
                %p174 = scmp.ge.s32.totalorder %s173, 1
                %s178 = sphi %s167, %s167
                %s179 = sphi %s164, %s164
              $region35: #{conv_block_forward.2} parent=31 // loop_header_branch
                %176 = sbr.rel (%p174) target = $region39
              $region36: #{conv_block_forward.2} parent=31 // loop_body
                %v180 = vld [vmem:[%s178] sm:$0xff]
                %181 = vst [vmem:[%s179] sm:$0xff] %v180
                %v182 = vld [vmem:[%s178 + $0x8] sm:$0xff]
                %183 = vst [vmem:[%s179 + $0x8] sm:$0xff] %v182
                %v184 = vld [vmem:[%s178 + $0x20] sm:$0xff]
                %185 = vst [vmem:[%s179 + $0x10] sm:$0xff] %v184
                %v186 = vld [vmem:[%s178 + $0x28] sm:$0xff]
                %187 = vst [vmem:[%s179 + $0x18] sm:$0xff] %v186
                %v188 = vld [vmem:[%s178 + $0x40] sm:$0xff]
                %189 = vst [vmem:[%s179 + $0x20] sm:$0xff] %v188
                %v190 = vld [vmem:[%s178 + $0x48] sm:$0xff]
                %191 = vst [vmem:[%s179 + $0x28] sm:$0xff] %v190
                %v192 = vld [vmem:[%s178 + $0x60] sm:$0xff]
                %193 = vst [vmem:[%s179 + $0x30] sm:$0xff] %v192
                %v194 = vld [vmem:[%s178 + $0x68] sm:$0xff]
                %195 = vst [vmem:[%s179 + $0x38] sm:$0xff] %v194
                %v196 = vld [vmem:[%s178 + $0x80] sm:$0xff]
                %197 = vst [vmem:[%s179 + $0x40] sm:$0xff] %v196
                %v198 = vld [vmem:[%s178 + $0x88] sm:$0xff]
                %199 = vst [vmem:[%s179 + $0x48] sm:$0xff] %v198
              $region37: #{conv_block_forward.2} parent=31 // loop_footer
                %s177 = sadd.s32 1, %s173
              $region38: #{conv_block_forward.2} parent=31 // loop_footer_branch
                %172 = sbr.rel target = $region34
              $region39: #{conv_block_forward.2} parent=31 // loop_exit
                _
            $region32: #{conv_block_forward.2} parent=27 // pred_fallthru
              _
            // Predicated region
            $region40: #{conv_block_forward.2} parent=27 // pred_check
              _
            $region41: #{conv_block_forward.2} parent=27 // pred_check_branch
              %201 = sbr.rel target = $region43
            $region42: #{conv_block_forward.2} parent=27 // pred_region
              _
            $region43: #{conv_block_forward.2} parent=27 // pred_fallthru
              _
          $region28: #{conv_block_forward.2} parent=23 // pred_fallthru
            _
          %202 = vnop
        $region24: #{conv_block_forward.2} parent=19 // pred_fallthru
          _
      $region20: #{conv_block_forward.2} parent=5 // pred_fallthru
        _
      %p203 = scmp.le.s32.totalorder 1, %s11
      %p204 = scmp.lt.s32.totalorder %s11, 3
      %p205 = pnand %p203, %p204
      %p206 = pneg %p205
      // Predicated region
      $region44: #{conv_block_forward.2} parent=5 // pred_check
        _
      $region45: #{conv_block_forward.2} parent=5 // pred_check_branch
        %208 = sbr.rel (%p205) target = $region47
      $region46: #{conv_block_forward.2} parent=5 // pred_region
        %s209 = ssub.s32 %s11, 1
        %s210 = sand.u32 %s45, 1
        %s211 = sand.u32 %s45, 1
        %s212 = smul.addr %s211, 80
        %s213 = scalar_lea.vmem [#allocation2], %s212
        // Predicated region
        $region48: #{conv_block_forward.2} parent=46 // pred_check
          %p214 = pneg %p58
        $region49: #{conv_block_forward.2} parent=46 // pred_check_branch
          %216 = sbr.rel (%p214) target = $region51
        $region50: #{conv_block_forward.2} parent=46 // pred_region
          _
        $region51: #{conv_block_forward.2} parent=46 // pred_fallthru
          _
        %p217 = pneg %p32
        %p218 = pneg %p29
        %s219 = sand.u32 %s45, 1
        %s220 = sand.u32 %s45, 1
        %s221 = smul.addr %s220, 80
        %s222 = scalar_lea.vmem [#allocation2], %s221
        %p223 = pneg %p58
        %p224 = pneg %p55
        %p225 = pneg %p84
        %p226 = pneg %p81
        %s227 = smul.u32 2, %s16
        %p228 = scmp.lt.s32.totalorder %s227, 3
        %s229 = scalar_select %p228, %s227, 3
        %s230 = smul.addr %s229, 8
        %s231 = scalar_lea.vmem %s2, %s230
        %p232 = pneg %p110
        %p233 = pneg %p107
        %p234 = scmp.lt.s32.totalorder %s16, 1
        %s235 = scalar_select %p234, %s16, 1
        %s236 = smul.addr %s235, 8
        %s237 = scalar_lea.vmem %s3, %s236
        %p238 = pneg %p136
        %p239 = pneg %p133
        %p240 = scmp.lt.s32.totalorder %s16, 1
        %s241 = scalar_select %p240, %s16, 1
        %s242 = smul.addr %s241, 8
        %s243 = scalar_lea.vmem %s4, %s242
        %s244 = smul.u32 2, %s16
        %s245 = smul.u32 2, %s16
        %p246 = scmp.lt.s32.totalorder %s245, 3
        %s247 = scalar_select %p246, %s245, 3
        %s248 = smul.addr %s247, 8
        %s249 = scalar_lea.vmem %s2, %s248
        %s250 = smul.u32 2, %s16
        %p251 = scmp.lt.s32.totalorder %s16, 1
        %s252 = scalar_select %p251, %s16, 1
        %s253 = smul.addr %s252, 8
        %s254 = scalar_lea.vmem %s3, %s253
        %p255 = scmp.lt.s32.totalorder %s16, 1
        %s256 = scalar_select %p255, %s16, 1
        %s257 = smul.addr %s256, 8
        %s258 = scalar_lea.vmem %s4, %s257
        %v259 = vld [vmem:[%s0] sm:$0xff]
        %v260 = vld [vmem:[%s213] sm:$0xff]
        %v261 = vld [vmem:[%s213 + $0x8] sm:$0xff]
        %v262 = vld [vmem:[%s213 + $0x10] sm:$0xff]
        %v263 = vld [vmem:[%s213 + $0x18] sm:$0xff]
        %v264 = vld [vmem:[%s213 + $0x20] sm:$0xff]
        %v265 = vld [vmem:[%s213 + $0x28] sm:$0xff]
        %v266 = vld [vmem:[%s213 + $0x30] sm:$0xff]
        %v267 = vld [vmem:[%s213 + $0x38] sm:$0xff]
        %v268 = vld [vmem:[%s213 + $0x40] sm:$0xf]
        %v269 = vld [vmem:[%s213 + $0x48] sm:$0xf]
        %vm270 = vcmask 293888
        %v272 = vsel %vm270, %v259, 0
        %vm274 = vcmask 1043456
        %v276 = vsel %vm274, %v268, 0
        %v279 = vsel %vm274, %v269, 0
        %281 = vmatpush.msra.mxu0 0.0
        %282 = vmatpush.msra.mxu0 0.0
        %283 = vmatpush.msra.mxu0 0.0
        %284 = vmatpush.msra.mxu0 0.0
        %285 = vmatpush.msra.mxu0 0.0
        %286 = vmatpush.msra.mxu0 0.0
        %287 = vmatpush.msra.mxu0 0.0
        %288 = vmatpush.msra.mxu0 0.0
        %289 = vmatpush.msra.mxu0 0.0
        %290 = vmatpush.msra.mxu0 0.0
        %291 = vmatpush.msra.mxu0 0.0
        %292 = vmatpush.msra.mxu0 %v276
        %293 = vmatpush.msra.mxu0 %v266
        %294 = vmatpush.msra.mxu0 %v264
        %295 = vmatpush.msra.mxu0 %v262
        %296 = vmatpush.msra.mxu0 %v260
        %297 = vmatmul.f32.gmra.mxu0 %v272
        %v298 = vpop.f32.mrf.mxu0
        %v299 = vadd.f32 0.0, %v298
        %300 = vdwg.mxu0
        %301 = vmatpush.msra.mxu0 0.0
        %302 = vmatpush.msra.mxu0 0.0
        %303 = vmatpush.msra.mxu0 0.0
        %304 = vmatpush.msra.mxu0 0.0
        %305 = vmatpush.msra.mxu0 0.0
        %306 = vmatpush.msra.mxu0 0.0
        %307 = vmatpush.msra.mxu0 0.0
        %308 = vmatpush.msra.mxu0 0.0
        %309 = vmatpush.msra.mxu0 0.0
        %310 = vmatpush.msra.mxu0 0.0
        %311 = vmatpush.msra.mxu0 0.0
        %312 = vmatpush.msra.mxu0 %v279
        %313 = vmatpush.msra.mxu0 %v267
        %314 = vmatpush.msra.mxu0 %v265
        %315 = vmatpush.msra.mxu0 %v263
        %316 = vmatpush.msra.mxu0 %v261
        %317 = vmatmul.f32.gmra.mxu0 %v272
        %v318 = vpop.f32.mrf.mxu0
        %v319 = vadd.f32 0.0, %v318
        %320 = vdwg.mxu0
        %321 = vst [vmem:[%s249] sm:$0xff] %v299
        %322 = vst [vmem:[%s249 + $0x8] sm:$0xff] %v319
        %v323 = vadd.f32 %v299, %v319
        %324 = vadd.xlane.f32.xlu0 %v323
        %v325 = vpop.xlane.xlu0 %324
        %vm326 = vcmask 7168
        %327 = vst.msk [vmem:[%s254] sm:$0xff] %vm326, %v325
        %v328 = vmul.f32 %v299, %v299
        %v329 = vmul.f32 %v319, %v319
        %v330 = vadd.f32 %v328, %v329
        %331 = vadd.xlane.f32.xlu0 %v330
        %v332 = vpop.xlane.xlu0 %331
        %333 = vst.msk [vmem:[%s258] sm:$0xff] %vm326, %v332
        %s334 = smul.u32 2, %s16
        %p335 = scmp.lt.s32.totalorder %s334, 3
        %s336 = scalar_select %p335, %s334, 3
        %s337 = smul.addr %s336, 8
        %s338 = scalar_lea.vmem %s2, %s337
        %p339 = scmp.lt.s32.totalorder %s16, 1
        %s340 = scalar_select %p339, %s16, 1
        %s341 = smul.addr %s340, 8
        %s342 = scalar_lea.vmem %s3, %s341
        %p343 = scmp.lt.s32.totalorder %s16, 1
        %s344 = scalar_select %p343, %s16, 1
        %s345 = smul.addr %s344, 8
        %s346 = scalar_lea.vmem %s4, %s345
        // Predicated region
        $region52: #{conv_block_forward.2} parent=46 // pred_check
          %p347 = pneg %p81
        $region53: #{conv_block_forward.2} parent=46 // pred_check_branch
          %349 = sbr.rel (%p347) target = $region55
        $region54: #{conv_block_forward.2} parent=46 // pred_region
          %s350 = smul.u32 2, %s16
        $region55: #{conv_block_forward.2} parent=46 // pred_fallthru
          _
        // Predicated region
        $region56: #{conv_block_forward.2} parent=46 // pred_check
          %p351 = pneg %p107
        $region57: #{conv_block_forward.2} parent=46 // pred_check_branch
          %353 = sbr.rel (%p351) target = $region59
        $region58: #{conv_block_forward.2} parent=46 // pred_region
          _
        $region59: #{conv_block_forward.2} parent=46 // pred_fallthru
          _
        // Predicated region
        $region60: #{conv_block_forward.2} parent=46 // pred_check
          %p354 = pneg %p133
        $region61: #{conv_block_forward.2} parent=46 // pred_check_branch
          %356 = sbr.rel (%p354) target = $region63
        $region62: #{conv_block_forward.2} parent=46 // pred_region
          _
        $region63: #{conv_block_forward.2} parent=46 // pred_fallthru
          _
      $region47: #{conv_block_forward.2} parent=5 // pred_fallthru
        _
      %p357 = scmp.le.s32.totalorder 2, %s11
      // Predicated region
      $region64: #{conv_block_forward.2} parent=5 // pred_check
        %p358 = pneg %p357
      $region65: #{conv_block_forward.2} parent=5 // pred_check_branch
        %360 = sbr.rel (%p358) target = $region67
      $region66: #{conv_block_forward.2} parent=5 // pred_region
        %s361 = ssub.s32 %s11, 2
        // Predicated region
        $region68: #{conv_block_forward.2} parent=66 // pred_check
          %p362 = pneg %p87
        $region69: #{conv_block_forward.2} parent=66 // pred_check_branch
          %364 = sbr.rel (%p362) target = $region71
        $region70: #{conv_block_forward.2} parent=66 // pred_region
          %s365 = smul.u32 2, %s17
          %p366 = scmp.lt.s32.totalorder %s365, 3
          %s367 = scalar_select %p366, %s365, 3
          %s368 = smul.addr %s367, 8
          %s369 = scalar_lea.vmem %s2, %s368
        $region71: #{conv_block_forward.2} parent=66 // pred_fallthru
          _
        // Predicated region
        $region72: #{conv_block_forward.2} parent=66 // pred_check
          %p370 = pneg %p113
        $region73: #{conv_block_forward.2} parent=66 // pred_check_branch
          %372 = sbr.rel (%p370) target = $region75
        $region74: #{conv_block_forward.2} parent=66 // pred_region
          %p373 = scmp.lt.s32.totalorder %s17, 1
          %s374 = scalar_select %p373, %s17, 1
          %s375 = smul.addr %s374, 8
          %s376 = scalar_lea.vmem %s3, %s375
        $region75: #{conv_block_forward.2} parent=66 // pred_fallthru
          _
        // Predicated region
        $region76: #{conv_block_forward.2} parent=66 // pred_check
          %p377 = pneg %p139
        $region77: #{conv_block_forward.2} parent=66 // pred_check_branch
          %379 = sbr.rel (%p377) target = $region79
        $region78: #{conv_block_forward.2} parent=66 // pred_region
          %p380 = scmp.lt.s32.totalorder %s17, 1
          %s381 = scalar_select %p380, %s17, 1
          %s382 = smul.addr %s381, 8
          %s383 = scalar_lea.vmem %s4, %s382
        $region79: #{conv_block_forward.2} parent=66 // pred_fallthru
          _
      $region67: #{conv_block_forward.2} parent=5 // pred_fallthru
        _
    $region6: #{conv_block_forward.2} parent=1 // loop_footer
      %s15 = sadd.s32 1, %s11
    $region7: #{conv_block_forward.2} parent=1 // loop_footer_branch
      %10 = sbr.rel target = $region3
    $region8: #{conv_block_forward.2} parent=1 // loop_exit
      _

// kernel: conv_block_forward.3
$region0: #{conv_block_forward.3}
  #allocation0 [shape = 'u32[]', space=smem, size = 0x4, offset = 0x4, fixed_abs, tag = 'smem constant byte address 0x4 - core index']
  #allocation1 [shape = 'u32[72,128]{1,0:T(1,128)}', space=vmem, size = 0x9000, scoped, tag = 'internal scratch']
  %s0 = inlined_call_operand.vmem [shape: f32[8,4,128], index: 0, kind: input, shape index: {}]
  %s1 = inlined_call_operand.vmem [shape: f32[8,1,1], index: 1, kind: input, shape index: {}]
  %s2 = inlined_call_operand.vmem [shape: f32[8,1,1], index: 2, kind: input, shape index: {}]
  %s3 = inlined_call_operand.vmem [shape: f32[8,128], index: 3, kind: output, shape index: {}]
  %s4 = sld [smem:[#allocation0]]
  $region22: #{conv_block_forward.3} parent=0
    _
  %s6 = ssub.s32 1, %s4
  %s7 = scalar_select 0, %s6, %s4
  // Predicated region
  $region2: #{conv_block_forward.3} parent=0 // pred_check
    _
  $region3: #{conv_block_forward.3} parent=0 // pred_check_branch
    %9 = sbr.rel (0) target = $region5
  $region4: #{conv_block_forward.3} parent=0 // pred_region
    _
  $region5: #{conv_block_forward.3} parent=0 // pred_fallthru
    _
  // Predicated region
  $region6: #{conv_block_forward.3} parent=0 // pred_check
    _
  $region7: #{conv_block_forward.3} parent=0 // pred_check_branch
    %11 = sbr.rel (0) target = $region9
  $region8: #{conv_block_forward.3} parent=0 // pred_region
    _
  $region9: #{conv_block_forward.3} parent=0 // pred_fallthru
    _
  // Predicated region
  $region10: #{conv_block_forward.3} parent=0 // pred_check
    _
  $region11: #{conv_block_forward.3} parent=0 // pred_check_branch
    %13 = sbr.rel (0) target = $region13
  $region12: #{conv_block_forward.3} parent=0 // pred_region
    _
  $region13: #{conv_block_forward.3} parent=0 // pred_fallthru
    _
  %v14 = vld [vmem:[%s0] sm:$0xf]
  %v15 = vld [vmem:[%s0 + $0x4] sm:$0xf]
  %v16 = vld [vmem:[%s0 + $0x8] sm:$0xf]
  %v17 = vld [vmem:[%s0 + $0xc] sm:$0xf]
  %v18 = vld [vmem:[%s0 + $0x10] sm:$0xf]
  %v19 = vld [vmem:[%s0 + $0x14] sm:$0xf]
  %v20 = vld [vmem:[%s0 + $0x18] sm:$0xf]
  %v21 = vld [vmem:[%s0 + $0x1c] sm:$0xf]
  %v22 = vld [vmem:[%s1] sm:$0x1]
  %v23 = vld [vmem:[%s1 + $0x1] sm:$0x1]
  %v24 = vld [vmem:[%s1 + $0x2] sm:$0x1]
  %v25 = vld [vmem:[%s1 + $0x3] sm:$0x1]
  %v26 = vld [vmem:[%s1 + $0x4] sm:$0x1]
  %v27 = vld [vmem:[%s1 + $0x5] sm:$0x1]
  %v28 = vld [vmem:[%s1 + $0x6] sm:$0x1]
  %v29 = vld [vmem:[%s1 + $0x7] sm:$0x1]
  %v38 = vperm.slane %v22, 0
  %v39 = vperm.slane %v23, 0
  %v40 = vperm.slane %v24, 0
  %v41 = vperm.slane %v25, 0
  %v42 = vperm.slane %v26, 0
  %v43 = vperm.slane %v27, 0
  %v44 = vperm.slane %v28, 0
  %v45 = vperm.slane %v29, 0
  %46 = vset.pattern.permute.xlu0 0
  %47 = vperm.xlu0 %46, %v38
  %v48 = vpop.permute.xlu0 %47
  %50 = vset.pattern.permute.xlu0 0
  %51 = vperm.xlu0 %50, %v39
  %v52 = vpop.permute.xlu0 %51
  %54 = vset.pattern.permute.xlu0 0
  %55 = vperm.xlu0 %54, %v40
  %v56 = vpop.permute.xlu0 %55
  %58 = vset.pattern.permute.xlu0 0
  %59 = vperm.xlu0 %58, %v41
  %v60 = vpop.permute.xlu0 %59
  %62 = vset.pattern.permute.xlu0 0
  %63 = vperm.xlu0 %62, %v42
  %v64 = vpop.permute.xlu0 %63
  %66 = vset.pattern.permute.xlu0 0
  %67 = vperm.xlu0 %66, %v43
  %v68 = vpop.permute.xlu0 %67
  %70 = vset.pattern.permute.xlu0 0
  %71 = vperm.xlu0 %70, %v44
  %v72 = vpop.permute.xlu0 %71
  %74 = vset.pattern.permute.xlu0 0
  %75 = vperm.xlu0 %74, %v45
  %v76 = vpop.permute.xlu0 %75
  %v78 = vmul.f32 %v14, %v48
  %v79 = vmul.f32 %v15, %v52
  %v80 = vmul.f32 %v16, %v56
  %v81 = vmul.f32 %v17, %v60
  %v82 = vmul.f32 %v18, %v64
  %v83 = vmul.f32 %v19, %v68
  %v84 = vmul.f32 %v20, %v72
  %v85 = vmul.f32 %v21, %v76
  %v86 = vld [vmem:[%s2] sm:$0x1]
  %v87 = vld [vmem:[%s2 + $0x1] sm:$0x1]
  %v88 = vld [vmem:[%s2 + $0x2] sm:$0x1]
  %v89 = vld [vmem:[%s2 + $0x3] sm:$0x1]
  %v90 = vld [vmem:[%s2 + $0x4] sm:$0x1]
  %v91 = vld [vmem:[%s2 + $0x5] sm:$0x1]
  %v92 = vld [vmem:[%s2 + $0x6] sm:$0x1]
  %v93 = vld [vmem:[%s2 + $0x7] sm:$0x1]
  %v102 = vperm.slane %v86, 0
  %v103 = vperm.slane %v87, 0
  %v104 = vperm.slane %v88, 0
  %v105 = vperm.slane %v89, 0
  %v106 = vperm.slane %v90, 0
  %v107 = vperm.slane %v91, 0
  %v108 = vperm.slane %v92, 0
  %v109 = vperm.slane %v93, 0
  %110 = vset.pattern.permute.xlu0 0
  %111 = vperm.xlu0 %110, %v102
  %v112 = vpop.permute.xlu0 %111
  %114 = vset.pattern.permute.xlu0 0
  %115 = vperm.xlu0 %114, %v103
  %v116 = vpop.permute.xlu0 %115
  %118 = vset.pattern.permute.xlu0 0
  %119 = vperm.xlu0 %118, %v104
  %v120 = vpop.permute.xlu0 %119
  %122 = vset.pattern.permute.xlu0 0
  %123 = vperm.xlu0 %122, %v105
  %v124 = vpop.permute.xlu0 %123
  %126 = vset.pattern.permute.xlu0 0
  %127 = vperm.xlu0 %126, %v106
  %v128 = vpop.permute.xlu0 %127
  %130 = vset.pattern.permute.xlu0 0
  %131 = vperm.xlu0 %130, %v107
  %v132 = vpop.permute.xlu0 %131
  %134 = vset.pattern.permute.xlu0 0
  %135 = vperm.xlu0 %134, %v108
  %v136 = vpop.permute.xlu0 %135
  %138 = vset.pattern.permute.xlu0 0
  %139 = vperm.xlu0 %138, %v109
  %v140 = vpop.permute.xlu0 %139
  %v142 = vadd.f32 %v78, %v112
  %v143 = vadd.f32 %v79, %v116
  %v144 = vadd.f32 %v80, %v120
  %v145 = vadd.f32 %v81, %v124
  %v146 = vadd.f32 %v82, %v128
  %v147 = vadd.f32 %v83, %v132
  %v148 = vadd.f32 %v84, %v136
  %v149 = vadd.f32 %v85, %v140
  %v158 = vrot.slane %v142, 1
  %v159 = vrot.slane %v143, 1
  %v160 = vrot.slane %v144, 1
  %v161 = vrot.slane %v145, 1
  %v162 = vrot.slane %v146, 1
  %v163 = vrot.slane %v147, 1
  %v164 = vrot.slane %v148, 1
  %v165 = vrot.slane %v149, 1
  %v174 = vmax.f32 %v142, %v158
  %v175 = vmax.f32 %v143, %v159
  %v176 = vmax.f32 %v144, %v160
  %v177 = vmax.f32 %v145, %v161
  %v178 = vmax.f32 %v146, %v162
  %v179 = vmax.f32 %v147, %v163
  %v180 = vmax.f32 %v148, %v164
  %v181 = vmax.f32 %v149, %v165
  %v190 = vrot.slane %v174, 2
  %v191 = vrot.slane %v175, 2
  %v192 = vrot.slane %v176, 2
  %v193 = vrot.slane %v177, 2
  %v194 = vrot.slane %v178, 2
  %v195 = vrot.slane %v179, 2
  %v196 = vrot.slane %v180, 2
  %v197 = vrot.slane %v181, 2
  %v206 = vmax.f32 %v174, %v190
  %v207 = vmax.f32 %v175, %v191
  %v208 = vmax.f32 %v176, %v192
  %v209 = vmax.f32 %v177, %v193
  %v210 = vmax.f32 %v178, %v194
  %v211 = vmax.f32 %v179, %v195
  %v212 = vmax.f32 %v180, %v196
  %v213 = vmax.f32 %v181, %v197
  %v214 = vmax.f32 %v206, 0.0
  %v215 = vmax.f32 %v207, 0.0
  %v216 = vmax.f32 %v208, 0.0
  %v217 = vmax.f32 %v209, 0.0
  %v218 = vmax.f32 %v210, 0.0
  %v219 = vmax.f32 %v211, 0.0
  %v220 = vmax.f32 %v212, 0.0
  %v221 = vmax.f32 %v213, 0.0
  %v230 = vrot.slane %v215, 7
  %vm231 = vcmask 1041409
  %v232 = vsel %vm231, %v230, %v214
  %v233 = vrot.slane %v216, 6
  %vm234 = vcmask 1042434
  %v235 = vsel %vm234, %v233, %v232
  %v236 = vrot.slane %v217, 5
  %vm237 = vcmask 1043459
  %v238 = vsel %vm237, %v236, %v235
  %v239 = vrot.slane %v218, 4
  %vm240 = vcmask 1044484
  %v241 = vsel %vm240, %v239, %v238
  %v242 = vrot.slane %v219, 3
  %vm243 = vcmask 1045509
  %v244 = vsel %vm243, %v242, %v241
  %v245 = vrot.slane %v220, 2
  %vm246 = vcmask 1046534
  %v247 = vsel %vm246, %v245, %v244
  %v248 = vrot.slane %v221, 1
  %vm249 = vcmask 1047559
  %v250 = vsel %vm249, %v248, %v247
  %252 = vst [vmem:[%s3] sm:$0xff] %v250
  // Predicated region
  $region14: #{conv_block_forward.3} parent=0 // pred_check
    _
  $region15: #{conv_block_forward.3} parent=0 // pred_check_branch
    %254 = sbr.rel (0) target = $region17
  $region16: #{conv_block_forward.3} parent=0 // pred_region
    _
  $region17: #{conv_block_forward.3} parent=0 // pred_fallthru
    _
  // Predicated region
  $region18: #{conv_block_forward.3} parent=0 // pred_check
    _
  $region19: #{conv_block_forward.3} parent=0 // pred_check_branch
    %256 = sbr.rel (0) target = $region21
  $region20: #{conv_block_forward.3} parent=0 // pred_region
    _
  $region21: #{conv_block_forward.3} parent=0 // pred_fallthru
    _

</llo_original>
